<compile_context>
chip_gen: v6e
topology: v6e:2x2x1
jax: 0.10.0
libtpu: 0.0.40
codegen_flags: <defaults>
</compile_context>

<pallas_src>
import functools

import jax
import jax.numpy as jnp
from jax.experimental import pallas as pl
from jax.experimental.pallas import tpu as pltpu


def _round_up(x, m):
    return ((x + m - 1) // m) * m


def _largest_divisor_tile(dim_pad, cap, unit):
    """Largest multiple of `unit` that divides dim_pad and is <= min(cap, dim_pad)."""
    best = unit
    t = unit
    lim = min(dim_pad, cap)
    while t <= lim:
        if dim_pad % t == 0:
            best = t
        t += unit
    return best


def _next_smaller_divisor(dim_pad, cur, unit):
    """Largest multiple of `unit` dividing dim_pad that is strictly < cur (min: unit)."""
    t = cur - unit
    while t >= unit:
        if dim_pad % t == 0:
            return t
        t -= unit
    return unit


def _linear_block_kernel(*refs, norm, activation, use_bias, output_dim, eps):
    it = iter(refs)
    x_ref = next(it)
    w_ref = next(it)
    b_ref = next(it) if use_bias else None
    if norm == 'ln':
        g_ref = next(it)
        beta_ref = next(it)
    o_ref = next(it)

    k = pl.program_id(2)

    @pl.when(k == 0)
    def _():
        o_ref[...] = jnp.zeros_like(o_ref)

    # bf16 x bf16 -> f32 accumulation on the MXU, directly into the resident
    # f32 output tile (its block index is k-invariant).
    o_ref[...] += jnp.dot(x_ref[...], w_ref[...],
                          preferred_element_type=jnp.float32)

    @pl.when(k == pl.num_programs(2) - 1)
    def _():
        out = o_ref[...]

        if use_bias:
            out = out + b_ref[...]                       # (tm, tn) + (1, tn)

        if norm == 'ln':
            # Full (padded) feature row is resident in this tile.  Padded
            # columns of `out` are exactly zero (zero-padded W and bias), so
            # the row sum over the padded tile equals the true row sum.
            n = float(output_dim)
            mean = jnp.sum(out, axis=1, keepdims=True) * (1.0 / n)
            centered = out - mean
            # Two-pass centered variance (stable); mask padded columns, which
            # would otherwise contribute (-mean)^2 to the sum of squares.
            if out.shape[1] > output_dim:
                col = jax.lax.broadcasted_iota(jnp.int32, out.shape, 1)
                centered_m = jnp.where(col < output_dim, centered, 0.0)
            else:
                centered_m = centered
            denom = max(n - 1.0, 1.0)                    # guard output_dim == 1
            var = jnp.sum(centered_m * centered_m, axis=1, keepdims=True) / denom
            std = jnp.sqrt(var)
            inv = pl.reciprocal(std + eps, approx=True)  # EUP slot, (tm, 1)
            # Fold gamma into the inverse-std multiply (one fewer full-tile mul).
            out = centered * (g_ref[...] * inv) + beta_ref[...]

        if activation == 'relu':
            out = jnp.maximum(out, 0.0)
        elif activation == 'lrelu':
            out = jnp.where(out >= 0, out, 0.2 * out)
        elif activation == 'tanh':
            out = jnp.tanh(out)
        elif activation == 'selu':
            alpha = 1.6732632423543772848170429916717
            scale = 1.0507009873554804934193349852946
            out = scale * jnp.where(out > 0, out, alpha * (jnp.exp(out) - 1.0))
        elif activation == 'none':
            pass

        o_ref[...] = out


class LinearBlockPallas:
    """JAX/Pallas port of CMOS-GAN LinearBlock (deterministic synthetic init)."""

    def __init__(self, input_dim, output_dim, norm='none', activation='relu',
                 use_bias=True, key=None):
        assert norm in ('none', 'sn', 'ln'), f'norm {norm} not supported here'
        assert activation in ('relu', 'lrelu', 'tanh', 'selu', 'none')
        self.input_dim = input_dim
        self.output_dim = output_dim
        self.norm = norm
        self.activation = activation
        self.use_bias = use_bias
        self.eps = 1e-5
        self.compute_dtype = jnp.bfloat16   # matmul operand dtype (f32 accumulation)

        if key is None:
            key = jax.random.PRNGKey(0)
        kw, kb, kg = jax.random.split(key, 3)
        bound = 1.0 / (input_dim ** 0.5)          # nn.Linear default init range
        # nn.Linear weight is (out, in); store transposed for the kernel.
        self.w_t = jax.random.uniform(kw, (input_dim, output_dim),
                                      jnp.float32, -bound, bound)
        self.b = jax.random.uniform(kb, (1, output_dim), jnp.float32, -bound, bound)
        # LayerNorm affine params (gamma ~ U(0,1), beta = 0)
        self.gamma = jax.random.uniform(kg, (1, output_dim), jnp.float32, 0.0, 1.0)
        self.beta = jnp.zeros((1, output_dim), jnp.float32)

        # ---- pad + cast ONCE and cache (no per-call weight traffic) --------
        self.K_pad = _round_up(input_dim, 128)
        self.N_pad = _round_up(output_dim, 128)
        pad_k = self.K_pad - input_dim
        pad_n = self.N_pad - output_dim
        self.w_pad = jnp.pad(self.w_t, ((0, pad_k), (0, pad_n))
                             ).astype(self.compute_dtype)
        # Epilogue stays in f32 (v5e VPU/EUP have no bf16 path).
        self.b_pad = jnp.pad(self.b, ((0, 0), (0, pad_n)))
        self.gamma_pad = jnp.pad(self.gamma, ((0, 0), (0, pad_n)))
        self.beta_pad = jnp.pad(self.beta, ((0, 0), (0, pad_n)))

    def _pick_tiles(self, M_pad):
        K_pad, N_pad = self.K_pad, self.N_pad

        def working_set(tm_, tk_, tn_):
            # double-buffered x + W + out tiles, plus the small (1, tn) vectors
            return (2 * tm_ * tk_ * 2 + 2 * tk_ * tn_ * 2 +
                    2 * tm_ * tn_ * 4 + 6 * tn_ * 4)

        tm = _largest_divisor_tile(M_pad, 256, 8)
        if self.norm == 'ln':
            tn = N_pad                                   # LN needs full feature row
            tk = _largest_divisor_tile(K_pad, 1024, 128)
            budget = 24 * 1024 * 1024                    # safe on v7x (64 MiB VMEM)
            while working_set(tm, tk, tn) > budget and tk > 128:
                tk = _next_smaller_divisor(K_pad, tk, 128)
            while working_set(tm, tk, tn) > budget and tm > 8:
                tm = _next_smaller_divisor(M_pad, tm, 8)
        else:
            tn = _largest_divisor_tile(N_pad, 1024, 128)  # lane-dense, big tiles
            tk = _largest_divisor_tile(K_pad, 1024, 128)

        # Guarantee >= 2 tiles on the parallel axes when possible so both v7x
        # TensorCores get work (no-op on single-TC v5e/v6e).
        if (M_pad // tm) * (N_pad // tn) == 1 and M_pad > 8:
            tm = _next_smaller_divisor(M_pad, tm, 8)

        return tm, tn, tk, working_set(tm, tk, tn)

    def __call__(self, x):
        B = x.shape[0]
        K, N = self.input_dim, self.output_dim
        K_pad, N_pad = self.K_pad, self.N_pad
        M_pad = _round_up(max(B, 1), 8)                  # sublane multiple

        tm, tn, tk, working = self._pick_tiles(M_pad)
        grid = (M_pad // tm, N_pad // tn, K_pad // tk)

        # Per-call: pad + cast the activation only (weights are cached).
        xb = jnp.pad(x.astype(self.compute_dtype),
                     ((0, M_pad - B), (0, K_pad - K)))

        in_specs = [
            pl.BlockSpec((tm, tk), lambda i, j, k: (i, k)),   # x
            pl.BlockSpec((tk, tn), lambda i, j, k: (k, j)),   # W^T
        ]
        args = [xb, self.w_pad]
        if self.use_bias:
            in_specs.append(pl.BlockSpec((1, tn), lambda i, j, k: (0, j)))
            args.append(self.b_pad)
        if self.norm == 'ln':
            in_specs.append(pl.BlockSpec((1, tn), lambda i, j, k: (0, j)))  # gamma
            in_specs.append(pl.BlockSpec((1, tn), lambda i, j, k: (0, j)))  # beta
            args.append(self.gamma_pad)
            args.append(self.beta_pad)

        # VMEM budget derived from the actual working set (with headroom),
        # capped at v7x's 64 MiB physical VMEM.
        vmem_limit = int(min(64 * 1024 * 1024,
                             max(32 * 1024 * 1024, 2 * working)))

        kernel = functools.partial(
            _linear_block_kernel,
            norm=self.norm, activation=self.activation, use_bias=self.use_bias,
            output_dim=self.output_dim, eps=self.eps)

        out_padded = pl.pallas_call(
            kernel,
            out_shape=jax.ShapeDtypeStruct((M_pad, N_pad), jnp.float32),
            grid_spec=pltpu.PrefetchScalarGridSpec(
                num_scalar_prefetch=0,
                grid=grid,
                in_specs=in_specs,
                out_specs=pl.BlockSpec((tm, tn), lambda i, j, k: (i, j)),
            ),
            compiler_params=pltpu.CompilerParams(
                dimension_semantics=("parallel", "parallel", "arbitrary"),
                vmem_limit_bytes=vmem_limit),
        )(*args)

        return out_padded[:B, :N]


def _reference(block, x):
    # Matches the kernel's compute path: bf16 operands, f32 accumulation.
    out = jnp.dot(x.astype(jnp.bfloat16), block.w_t.astype(jnp.bfloat16),
                  preferred_element_type=jnp.float32)
    if block.use_bias:
        out = out + block.b
    if block.norm == 'ln':
        mean = jnp.mean(out, axis=1, keepdims=True)
        std = jnp.std(out, axis=1, keepdims=True, ddof=1)
        out = (out - mean) / (std + block.eps)
        out = out * block.gamma + block.beta
    if block.activation == 'relu':
        out = jnp.maximum(out, 0.0)
    elif block.activation == 'lrelu':
        out = jnp.where(out >= 0, out, 0.2 * out)
    elif block.activation == 'tanh':
        out = jnp.tanh(out)
    elif block.activation == 'selu':
        alpha = 1.6732632423543772848170429916717
        scale = 1.0507009873554804934193349852946
        out = scale * jnp.where(out > 0, out, alpha * (jnp.exp(out) - 1.0))
    return out


if __name__ == "__main__":
    key = jax.random.PRNGKey(0)
    kx, kp1, kp2 = jax.random.split(key, 3)

    B, input_dim, output_dim = 8, 32, 64
    x = jax.random.normal(kx, (B, input_dim), jnp.float32)

    # default config: norm='none', activation='relu', use_bias=True
    block = LinearBlockPallas(input_dim, output_dim, norm='none',
                              activation='relu', use_bias=True, key=kp1)
    out = jax.block_until_ready(block(x))
    ref = _reference(block, x)
    assert out.shape == (B, output_dim)
    assert jnp.allclose(out, ref, atol=1e-4, rtol=1e-4), \
        f"max err {jnp.max(jnp.abs(out - ref))}"

    # 'ln' variant exercised as well (computed fully inside the kernel).
    block_ln = LinearBlockPallas(input_dim, output_dim, norm='ln',
                                 activation='relu', use_bias=True, key=kp2)
    out_ln = jax.block_until_ready(block_ln(x))
    ref_ln = _reference(block_ln, x)
    assert jnp.allclose(out_ln, ref_ln, atol=2e-3, rtol=2e-3), \
        f"max err {jnp.max(jnp.abs(out_ln - ref_ln))}"

    print("KERNEL_OK")
</pallas_src>

<mosaic_0001>
module attributes {stable_mosaic.version = 11 : i64} {
  func.func @_linear_block_kernel(%arg0: i32, %arg1: i32, %arg2: i32, %arg3: memref<8x128xbf16, #tpu.memory_space<vmem>>, %arg4: memref<128x128xbf16, #tpu.memory_space<vmem>>, %arg5: memref<1x128xf32, #tpu.memory_space<vmem>>, %arg6: memref<8x128xf32, #tpu.memory_space<vmem>>) attributes {dimension_semantics = [#tpu.dimension_semantics<parallel>, #tpu.dimension_semantics<parallel>, #tpu.dimension_semantics<arbitrary>], iteration_bounds = array<i64: 1, 1, 1>, scalar_prefetch = 0 : i64, scratch_operands = 0 : i64, tpu.core_type = #tpu.core_type<tc>, window_params = [{transform_indices = @transform_0, window_bounds = array<i64: 8, 128>}, {transform_indices = @transform_1, window_bounds = array<i64: 128, 128>}, {transform_indices = @transform_2, window_bounds = array<i64: 1, 128>}, {transform_indices = @transform_3, window_bounds = array<i64: 8, 128>}]} {
    %c0_i32 = arith.constant 0 : i32
    %0 = arith.cmpi eq, %arg2, %c0_i32 : i32
    %1 = arith.extui %0 : i1 to i32
    %c0_i32_0 = arith.constant 0 : i32
    %2 = arith.cmpi ne, %1, %c0_i32_0 : i32
    scf.if %2 {
      %cst_10 = arith.constant 0.000000e+00 : f32
      %12 = vector.broadcast %cst_10 : f32 to vector<8x128xf32>
      %c0_11 = arith.constant 0 : index
      %c0_12 = arith.constant 0 : index
      %13 = vector.load %arg6[%c0_11, %c0_12] : memref<8x128xf32, #tpu.memory_space<vmem>>, vector<8x128xf32>
      tpu.vector_store %arg6[%c0_11, %c0_12], %12 {strides = array<i32>} : memref<8x128xf32, #tpu.memory_space<vmem>>, vector<8x128xf32>,
    } else {
    }
    %c0 = arith.constant 0 : index
    %c0_1 = arith.constant 0 : index
    %3 = vector.load %arg6[%c0, %c0_1] : memref<8x128xf32, #tpu.memory_space<vmem>>, vector<8x128xf32>
    %c0_2 = arith.constant 0 : index
    %c0_3 = arith.constant 0 : index
    %4 = vector.load %arg3[%c0_2, %c0_3] : memref<8x128xbf16, #tpu.memory_space<vmem>>, vector<8x128xbf16>
    %c0_4 = arith.constant 0 : index
    %c0_5 = arith.constant 0 : index
    %5 = vector.load %arg4[%c0_4, %c0_5] : memref<128x128xbf16, #tpu.memory_space<vmem>>, vector<128x128xbf16>
    %cst = arith.constant dense<0.000000e+00> : vector<8x128xf32>
    %6 = tpu.matmul %4, %5, %cst {dimension_numbers = #tpu.dot_dimension_numbers<[1], [0], [0], [1], [0, 0, 1, 1], [], []>} : vector<8x128xbf16>, vector<128x128xbf16>, vector<8x128xf32> -> vector<8x128xf32>
    %7 = arith.addf %3, %6 : vector<8x128xf32>
    %c0_6 = arith.constant 0 : index
    %c0_7 = arith.constant 0 : index
    %8 = vector.load %arg6[%c0_6, %c0_7] : memref<8x128xf32, #tpu.memory_space<vmem>>, vector<8x128xf32>
    tpu.vector_store %arg6[%c0_6, %c0_7], %7 {strides = array<i32>} : memref<8x128xf32, #tpu.memory_space<vmem>>, vector<8x128xf32>,
    %c0_i32_8 = arith.constant 0 : i32
    %9 = arith.cmpi eq, %arg2, %c0_i32_8 : i32
    %10 = arith.extui %9 : i1 to i32
    %c0_i32_9 = arith.constant 0 : i32
    %11 = arith.cmpi ne, %10, %c0_i32_9 : i32
    scf.if %11 {
      %c0_10 = arith.constant 0 : index
      %c0_11 = arith.constant 0 : index
      %12 = vector.load %arg6[%c0_10, %c0_11] : memref<8x128xf32, #tpu.memory_space<vmem>>, vector<8x128xf32>
      %c0_12 = arith.constant 0 : index
      %c0_13 = arith.constant 0 : index
      %13 = vector.load %arg5[%c0_12, %c0_13] : memref<1x128xf32, #tpu.memory_space<vmem>>, vector<1x128xf32>
      %14 = vector.broadcast %13 : vector<1x128xf32> to vector<8x128xf32>
      %15 = arith.addf %12, %14 : vector<8x128xf32>
      %cst_14 = arith.constant 0.000000e+00 : f32
      %16 = vector.broadcast %cst_14 : f32 to vector<8x128xf32>
      %17 = arith.maximumf %15, %16 : vector<8x128xf32>
      %c0_15 = arith.constant 0 : index
      %c0_16 = arith.constant 0 : index
      %18 = vector.load %arg6[%c0_15, %c0_16] : memref<8x128xf32, #tpu.memory_space<vmem>>, vector<8x128xf32>
      tpu.vector_store %arg6[%c0_15, %c0_16], %17 {strides = array<i32>} : memref<8x128xf32, #tpu.memory_space<vmem>>, vector<8x128xf32>,
    } else {
    }
    return
  }
  func.func @transform_0(%arg0: i32, %arg1: i32, %arg2: i32) -> (i32, i32) {
    %c0_i32 = arith.constant 0 : i32
    return %arg0, %arg2 : i32, i32
  }
  func.func @transform_1(%arg0: i32, %arg1: i32, %arg2: i32) -> (i32, i32) {
    %c0_i32 = arith.constant 0 : i32
    return %arg2, %arg1 : i32, i32
  }
  func.func @transform_2(%arg0: i32, %arg1: i32, %arg2: i32) -> (i32, i32) {
    %c0_i32 = arith.constant 0 : i32
    %c0_i32_0 = arith.constant 0 : i32
    return %c0_i32, %arg1 : i32, i32
  }
  func.func @transform_3(%arg0: i32, %arg1: i32, %arg2: i32) -> (i32, i32) {
    %c0_i32 = arith.constant 0 : i32
    return %arg0, %arg1 : i32, i32
  }
}

</mosaic_0001>

<llo_original>
// kernel: tpu_custom_call.1
$region0: #{tpu_custom_call.1}
  #allocation0 [shape = 'u32[]', space=smem, size = 0x4, offset = 0x4, fixed_abs, tag = 'smem constant byte address 0x4 - core index']
  #allocation1 [shape = 'u32[144,128]{1,0:T(1,128)}', space=vmem, size = 0x12000, scoped, tag = 'internal scratch']
  %s0 = inlined_call_operand.hbm [shape: bf16[8,128], index: 0, kind: input, shape index: {}]
  %s1 = inlined_call_operand.hbm [shape: bf16[128,128], index: 1, kind: input, shape index: {}]
  %s2 = inlined_call_operand.vmem [shape: f32[1,128], index: 2, kind: input, shape index: {}]
  %s3 = inlined_call_operand.hbm [shape: f32[8,128], index: 3, kind: output, shape index: {}]
  %s4 = sld [smem:[#allocation0]]
  $region38: #{tpu_custom_call.1} parent=0
    _
  %s6 = ssub.s32 1, %s4
  %s7 = scalar_select 0, %s6, %s4
  $region1: #{tpu_custom_call.1} parent=0
    #allocation2 [shape = 'u8[2048]{0}', space=vmem, size = 0x800, scoped, tag = 'input window, operand 0, single buffered']
    #allocation3 [shape = 's32[1]{0}', space=sflag, size = 0x4, scoped, tag = 'scoped memory for tpu_custom_call.1']
    #allocation4 [shape = 's32[1]{0}', space=sflag, size = 0x4, scoped, tag = 'scoped memory for tpu_custom_call.1']
    #allocation5 [shape = 'u8[32768]{0}', space=vmem, size = 0x8000, scoped, tag = 'input window, operand 1, single buffered']
    #allocation6 [shape = 's32[1]{0}', space=sflag, size = 0x4, scoped, tag = 'scoped memory for tpu_custom_call.1']
    #allocation7 [shape = 'u8[4096]{0}', space=vmem, size = 0x1000, scoped, tag = 'output window, operand 0, single buffered']
    %8 = vsyncpa [#allocation3], 0
    %9 = vsyncpa [#allocation6], 0
    %10 = vsyncpa [#allocation4], 0
    // Predicated region
    $region2: #{tpu_custom_call.1} parent=1 // pred_check
      _
    $region3: #{tpu_custom_call.1} parent=1 // pred_check_branch
      %12 = sbr.rel (0) target = $region5
    $region4: #{tpu_custom_call.1} parent=1 // pred_region
      %s14 = ssub.s32 64, 64
      %15 = vsyncadd [#allocation3], %s14
      %s17 = sshll.u32 [#allocation2], 4
      %s18 = int_to_ptr.vmem [resolvable:$true] %s17
      %20 = dma.hbm_to_vmem [thread:$0]  %s0, 64, %s18, [#allocation3]
    $region5: #{tpu_custom_call.1} parent=1 // pred_fallthru
      _
    // Predicated region
    $region6: #{tpu_custom_call.1} parent=1 // pred_check
      _
    $region7: #{tpu_custom_call.1} parent=1 // pred_check_branch
      %22 = sbr.rel (0) target = $region9
    $region8: #{tpu_custom_call.1} parent=1 // pred_region
      %s24 = ssub.s32 1024, 1024
      %25 = vsyncadd [#allocation6], %s24
      %s26 = sshll.u32 [#allocation5], 4
      %s27 = int_to_ptr.vmem [resolvable:$true] %s26
      %32 = dma.hbm_to_vmem [thread:$0]  %s1, 1024, %s27, [#allocation6], 64, 64, 4
    $region9: #{tpu_custom_call.1} parent=1 // pred_fallthru
      _
    // Predicated region
    $region10: #{tpu_custom_call.1} parent=1 // pred_check
      _
    $region11: #{tpu_custom_call.1} parent=1 // pred_check_branch
      %34 = sbr.rel (0) target = $region13
    $region12: #{tpu_custom_call.1} parent=1 // pred_region
      _
    $region13: #{tpu_custom_call.1} parent=1 // pred_fallthru
      _
    // Predicated region
    $region14: #{tpu_custom_call.1} parent=1 // pred_check
      _
    $region15: #{tpu_custom_call.1} parent=1 // pred_check_branch
      %36 = sbr.rel (0) target = $region17
    $region16: #{tpu_custom_call.1} parent=1 // pred_region
      %37 = dma.done [#allocation3], 64
    $region17: #{tpu_custom_call.1} parent=1 // pred_fallthru
      _
    // Predicated region
    $region18: #{tpu_custom_call.1} parent=1 // pred_check
      _
    $region19: #{tpu_custom_call.1} parent=1 // pred_check_branch
      %39 = sbr.rel (0) target = $region21
    $region20: #{tpu_custom_call.1} parent=1 // pred_region
      %40 = dma.done [#allocation6], 1024
    $region21: #{tpu_custom_call.1} parent=1 // pred_fallthru
      _
    %p42 = scmp.eq.s32.totalorder 0, 0
    // Predicated region
    $region22: #{tpu_custom_call.1} parent=1 // pred_check
      %p43 = pneg %p42
    $region23: #{tpu_custom_call.1} parent=1 // pred_check_branch
      %45 = sbr.rel (%p43) target = $region25
    $region24: #{tpu_custom_call.1} parent=1 // pred_region
      %46 = vst [vmem:[#allocation7] sm:$0xff] 0.0
    $region25: #{tpu_custom_call.1} parent=1 // pred_fallthru
      _
    %v47 = vld [vmem:[#allocation7] sm:$0xff]
    %v48 = vld [vmem:[#allocation2] sm:$0xf]
    %v49 = vld [vmem:[#allocation5] sm:$0xf]
    %v50 = vld [vmem:[#allocation5 + $0x4] sm:$0xf]
    %v51 = vld [vmem:[#allocation5 + $0x8] sm:$0xf]
    %v52 = vld [vmem:[#allocation5 + $0xc] sm:$0xf]
    %v53 = vld [vmem:[#allocation5 + $0x10] sm:$0xf]
    %v54 = vld [vmem:[#allocation5 + $0x14] sm:$0xf]
    %v55 = vld [vmem:[#allocation5 + $0x18] sm:$0xf]
    %v56 = vld [vmem:[#allocation5 + $0x1c] sm:$0xf]
    %v57 = vld [vmem:[#allocation5 + $0x20] sm:$0xf]
    %v58 = vld [vmem:[#allocation5 + $0x24] sm:$0xf]
    %v59 = vld [vmem:[#allocation5 + $0x28] sm:$0xf]
    %v60 = vld [vmem:[#allocation5 + $0x2c] sm:$0xf]
    %v61 = vld [vmem:[#allocation5 + $0x30] sm:$0xf]
    %v62 = vld [vmem:[#allocation5 + $0x34] sm:$0xf]
    %v63 = vld [vmem:[#allocation5 + $0x38] sm:$0xf]
    %v64 = vld [vmem:[#allocation5 + $0x3c] sm:$0xf]
    %v81 = vunpack.c.l.b16 %v49
    %v82 = vunpack.c.l.b16 %v50
    %v83 = vunpack.c.l.b16 %v51
    %v84 = vunpack.c.l.b16 %v52
    %v85 = vunpack.c.l.b16 %v53
    %v86 = vunpack.c.l.b16 %v54
    %v87 = vunpack.c.l.b16 %v55
    %v88 = vunpack.c.l.b16 %v56
    %v89 = vunpack.c.l.b16 %v57
    %v90 = vunpack.c.l.b16 %v58
    %v91 = vunpack.c.l.b16 %v59
    %v92 = vunpack.c.l.b16 %v60
    %v93 = vunpack.c.l.b16 %v61
    %v94 = vunpack.c.l.b16 %v62
    %v95 = vunpack.c.l.b16 %v63
    %v96 = vunpack.c.l.b16 %v64
    %v97 = vpack.c.b16 %v82, %v81
    %v98 = vpack.c.b16 %v84, %v83
    %v99 = vpack.c.b16 %v86, %v85
    %v100 = vpack.c.b16 %v88, %v87
    %v101 = vpack.c.b16 %v90, %v89
    %v102 = vpack.c.b16 %v92, %v91
    %v103 = vpack.c.b16 %v94, %v93
    %v104 = vpack.c.b16 %v96, %v95
    %113 = vmatprep.subr.bf16.mxu0 0
    %114 = vmatpush1.bf16.msra.mxu0 %v104
    %115 = vmatprep.subr.bf16.mxu0 0
    %116 = vmatpush1.bf16.msra.mxu0 %v103
    %117 = vmatprep.subr.bf16.mxu0 0
    %118 = vmatpush1.bf16.msra.mxu0 %v102
    %119 = vmatprep.subr.bf16.mxu0 0
    %120 = vmatpush1.bf16.msra.mxu0 %v101
    %121 = vmatprep.subr.bf16.mxu0 0
    %122 = vmatpush1.bf16.msra.mxu0 %v100
    %123 = vmatprep.subr.bf16.mxu0 0
    %124 = vmatpush1.bf16.msra.mxu0 %v99
    %125 = vmatprep.subr.bf16.mxu0 0
    %126 = vmatpush1.bf16.msra.mxu0 %v98
    %127 = vmatprep.subr.bf16.mxu0 0
    %128 = vmatpush1.bf16.msra.mxu0 %v97
    %129 = vmatprep.subr.bf16.mxu0 0
    %130 = vmatpush2.bf16.msra.mxu0 0
    %131 = vmatprep.subr.bf16.mxu0 0
    %132 = vmatpush2.bf16.msra.mxu0 0
    %133 = vmatprep.subr.bf16.mxu0 0
    %134 = vmatpush2.bf16.msra.mxu0 0
    %135 = vmatprep.subr.bf16.mxu0 0
    %136 = vmatpush2.bf16.msra.mxu0 0
    %137 = vmatprep.subr.bf16.mxu0 0
    %138 = vmatpush2.bf16.msra.mxu0 0
    %139 = vmatprep.subr.bf16.mxu0 0
    %140 = vmatpush2.bf16.msra.mxu0 0
    %141 = vmatprep.subr.bf16.mxu0 0
    %142 = vmatpush2.bf16.msra.mxu0 0
    %143 = vmatprep.subr.bf16.mxu0 0
    %144 = vmatpush2.bf16.msra.mxu0 0
    %145 = vmatprep.mubr.bf16.mxu0 0
    %146 = vmatmul.mubr.bf16.gmra.mxu0 %v48
    %v147 = vpop.f32.mrf.mxu0
    %v148 = vadd.f32 0.0, %v147
    %v149 = vpop.f32.mrf.mxu0
    %v150 = vpop.f32.mrf.mxu0
    %v151 = vpop.f32.mrf.mxu0
    %152 = vdwg.mxu0
    %v153 = vadd.f32 %v47, %v148
    %154 = vst [vmem:[#allocation7] sm:$0xff] %v153
    // Predicated region
    $region26: #{tpu_custom_call.1} parent=1 // pred_check
      %p155 = pneg %p42
    $region27: #{tpu_custom_call.1} parent=1 // pred_check_branch
      %157 = sbr.rel (%p155) target = $region29
    $region28: #{tpu_custom_call.1} parent=1 // pred_region
      %v158 = vld [vmem:[#allocation7] sm:$0xff]
      %v159 = vld [vmem:[%s2] sm:$0x1]
      %v161 = vlaneseq
      %v162 = vshrl.u32 %v161, 7
      %v163 = vsub.s32 0, %v162
      %v164 = vrot.slane %v159, %v163
      %v166 = vadd.f32 %v158, %v164
      %v167 = vmax.f32 %v166, 0.0
      %168 = vst [vmem:[#allocation7] sm:$0xff] %v167
    $region29: #{tpu_custom_call.1} parent=1 // pred_fallthru
      _
    // Predicated region
    $region30: #{tpu_custom_call.1} parent=1 // pred_check
      _
    $region31: #{tpu_custom_call.1} parent=1 // pred_check_branch
      %170 = sbr.rel (0) target = $region33
    $region32: #{tpu_custom_call.1} parent=1 // pred_region
      %s172 = ssub.s32 128, 128
      %173 = vsyncadd [#allocation4], %s172
      %s175 = sshll.u32 [#allocation7], 4
      %s176 = int_to_ptr.vmem [resolvable:$true] %s175
      %178 = dma.vmem_to_hbm [thread:$0]  %s176, 128, %s3, [#allocation4]
    $region33: #{tpu_custom_call.1} parent=1 // pred_fallthru
      _
    // Predicated region
    $region34: #{tpu_custom_call.1} parent=1 // pred_check
      _
    $region35: #{tpu_custom_call.1} parent=1 // pred_check_branch
      %180 = sbr.rel (0) target = $region37
    $region36: #{tpu_custom_call.1} parent=1 // pred_region
      %181 = dma.done [#allocation4], 128
    $region37: #{tpu_custom_call.1} parent=1 // pred_fallthru
      _
    %182 = vsyncpa [#allocation3], 1
    %183 = vsyncpa [#allocation6], 1
    %184 = vsyncpa [#allocation4], 1

</llo_original>
